<compile_context>
chip_gen: v5e
topology: v5e:2x2
jax: 0.10.0
libtpu: 0.0.40
codegen_flags: <defaults>
</compile_context>

<pallas_src>
import functools

import jax
import jax.numpy as jnp
from jax.experimental import pallas as pl
from jax.experimental.pallas import tpu as pltpu


def _round_up(v, m):
    return (v + m - 1) // m * m


def _vmem_capacity_bytes():
    """Physical per-core VMEM; conservative 64 MiB (v7x) fallback if query fails."""
    try:
        cap = int(getattr(pltpu.get_tpu_info(), "vmem_capacity_bytes", 0))
        if cap > 0:
            return cap
    except Exception:
        pass
    return 64 * 1024 * 1024


# ----------------------------- kernels ---------------------------------------


def _bn_act_epilogue(y, gb_ref, o_ref, *, use_tanh, eps):
    # BatchNorm1d training-mode forward: biased batch statistics over axis 0.
    mean = jnp.mean(y, axis=0, keepdims=True)
    centered = y - mean
    var = jnp.mean(centered * centered, axis=0, keepdims=True)
    gamma = gb_ref[0:1, :]
    beta = gb_ref[1:2, :]
    scale = jax.lax.rsqrt(var + eps) * gamma          # single (1, TN) vector
    z = centered * scale + beta
    z = jnp.tanh(z) if use_tanh else jnp.maximum(z, 0.0)
    o_ref[...] = z.astype(o_ref.dtype)


def _fc_block_kernel_single(x_ref, w_ref, gb_ref, o_ref, *, use_tanh, eps):
    # Full-K path: one MXU dot per out-feature tile, fused BN + activation.
    y = jnp.dot(x_ref[...], w_ref[...], preferred_element_type=jnp.float32)
    _bn_act_epilogue(y, gb_ref, o_ref, use_tanh=use_tanh, eps=eps)


def _fc_block_kernel_ktiled(x_ref, w_ref, gb_ref, o_ref, acc_ref, *, use_tanh, eps):
    # K-tiled path: direct store of the first partial dot, += afterwards,
    # BN + activation epilogue only on the last K step.
    k = pl.program_id(1)
    part = jnp.dot(x_ref[...], w_ref[...], preferred_element_type=jnp.float32)

    @pl.when(k == 0)
    def _store_first():
        acc_ref[...] = part

    @pl.when(k > 0)
    def _accumulate():
        acc_ref[...] += part

    @pl.when(k == pl.num_programs(1) - 1)
    def _epilogue():
        _bn_act_epilogue(acc_ref[...], gb_ref, o_ref, use_tanh=use_tanh, eps=eps)


# ----------------------------- wrappers ---------------------------------------


def prepare_fc_block_params(w, gamma, beta, b=None, *, matmul_dtype=jnp.bfloat16,
                            tn=None):
    """Call ONCE at parameter init: pad + cast W, pack gamma/beta.

    w:      (in_features, out_features)  fc1.weight pre-transposed
    gamma:  (out_features,)              bn1.weight
    beta:   (out_features,)              bn1.bias
    b:      (out_features,) or None      fc1.bias -- accepted for API parity but unused:
            training-mode BN mean subtraction cancels it exactly.  (Would NOT hold for
            BN in eval mode / running stats.)
    """
    del b
    in_features, out_features = w.shape
    o128 = _round_up(out_features, 128)

    if tn is None:
        if o128 <= 256:
            tn = o128                              # single lane-dense tile
        elif o128 <= 1024:
            tn = _round_up((o128 + 1) // 2, 128)   # >= 2 out tiles (v7x megacore)
        else:
            tn = 512
    assert tn % 128 == 0

    k_pad = _round_up(in_features, 128)
    o_pad = _round_up(o128, tn)                    # pad UP to TN multiple, never snap to 128

    w_p = jnp.pad(w, ((0, k_pad - in_features), (0, o_pad - out_features)))
    if matmul_dtype is not None:
        w_p = w_p.astype(matmul_dtype)             # bf16 in HBM: half the W DMA bytes

    gb = jnp.stack(
        [jnp.pad(gamma.astype(jnp.float32), (0, o_pad - out_features)),
         jnp.pad(beta.astype(jnp.float32), (0, o_pad - out_features))],
        axis=0,
    )
    return {"w": w_p, "gb": gb, "tn": int(tn),
            "in_features": int(in_features), "out_features": int(out_features),
            "matmul_dtype": matmul_dtype}


def fc_block_apply(x, params, *, use_tanh=False, eps=1e-5, vmem_budget_bytes=None):
    """Fused Linear + BatchNorm1d(train) + ReLU/tanh on pre-prepared params."""
    n, in_features = x.shape
    assert in_features == params["in_features"]
    w_p, gb = params["w"], params["gb"]
    k_pad, o_pad = w_p.shape
    tn = params["tn"]
    out_features = params["out_features"]
    matmul_dtype = params["matmul_dtype"]

    out_dtype = x.dtype
    mm_dtype = matmul_dtype if matmul_dtype is not None else x.dtype
    mm_bytes = jnp.dtype(mm_dtype).itemsize
    out_bytes = jnp.dtype(out_dtype).itemsize

    # Only x (n rows, cheap vs W) is padded / cast per call.
    x_p = x
    if k_pad != in_features:
        x_p = jnp.pad(x_p, ((0, 0), (0, k_pad - in_features)))
    if x_p.dtype != mm_dtype:
        x_p = x_p.astype(mm_dtype)

    cap = _vmem_capacity_bytes()
    budget = int(0.65 * cap) if vmem_budget_bytes is None else int(vmem_budget_bytes)
    n_r = _round_up(max(n, 1), 8)

    def _need(tk, ktiled):
        bytes_ = 2 * n_r * tk * mm_bytes      # x slab (double-buffered)
        bytes_ += 2 * tk * tn * mm_bytes      # W tile (double-buffered)
        bytes_ += 2 * n_r * tn * out_bytes    # output tile (double-buffered)
        bytes_ += 2 * 8 * tn * 4              # gamma/beta tile (sublane-padded)
        if ktiled:
            bytes_ += n_r * tn * 4            # f32 accumulator scratch
        return bytes_

    # Prefer no K grid axis at all; otherwise largest 128-multiple divisor of K that fits.
    if _need(k_pad, False) <= budget:
        tk, ktiled = k_pad, False
    else:
        tk = None
        t = 128
        while t < k_pad:
            if k_pad % t == 0 and _need(t, True) <= budget:
                tk = t
            t += 128
        if tk is None:
            # TODO(synk): batch-tiled two-pass BN (sum / sum-of-squares accumulators)
            #             for batches too large to keep (n x tk) resident in VMEM.
            raise NotImplementedError(
                "batch too large for the untiled-batch fc_block on this VMEM budget")
        ktiled = True

    need = _need(tk, ktiled)
    vmem_limit = int(min(int(0.75 * cap), max(2 * need, 16 * 1024 * 1024)))

    if not ktiled:
        kernel = functools.partial(_fc_block_kernel_single, use_tanh=use_tanh, eps=eps)
        grid = (o_pad // tn,)
        in_specs = [
            pl.BlockSpec((n, k_pad), lambda j: (0, 0)),     # full-K x slab (fetched once)
            pl.BlockSpec((k_pad, tn), lambda j: (0, j)),    # W slab
            pl.BlockSpec((2, tn), lambda j: (0, j)),        # gamma/beta
        ]
        out_specs = pl.BlockSpec((n, tn), lambda j: (0, j))
        scratch_shapes = []
        dim_sem = ("parallel",)
    else:
        kernel = functools.partial(_fc_block_kernel_ktiled, use_tanh=use_tanh, eps=eps)
        grid = (o_pad // tn, k_pad // tk)   # (out tiles [parallel], K tiles [reduction])
        in_specs = [
            pl.BlockSpec((n, tk), lambda j, k: (0, k)),
            pl.BlockSpec((tk, tn), lambda j, k: (k, j)),
            pl.BlockSpec((2, tn), lambda j, k: (0, j)),
        ]
        out_specs = pl.BlockSpec((n, tn), lambda j, k: (0, j))
        scratch_shapes = [pltpu.VMEM((n, tn), jnp.float32)]
        dim_sem = ("parallel", "arbitrary")

    out_padded = pl.pallas_call(
        kernel,
        out_shape=jax.ShapeDtypeStruct((n, o_pad), out_dtype),
        grid_spec=pltpu.PrefetchScalarGridSpec(
            num_scalar_prefetch=0,
            grid=grid,
            in_specs=in_specs,
            out_specs=out_specs,
            scratch_shapes=scratch_shapes,
        ),
        compiler_params=pltpu.CompilerParams(
            dimension_semantics=dim_sem,
            vmem_limit_bytes=vmem_limit,
        ),
    )(x_p, w_p, gb)

    return out_padded[:, :out_features]


def fc_block(x, w, gamma, beta, b=None, *, use_tanh=False, eps=1e-5,
             matmul_dtype=jnp.bfloat16):
    """One-shot convenience wrapper (prepares params per call; prefer
    prepare_fc_block_params() once + fc_block_apply() in real models)."""
    params = prepare_fc_block_params(w, gamma, beta, b, matmul_dtype=matmul_dtype)
    return fc_block_apply(x, params, use_tanh=use_tanh, eps=eps)


# ----------------------------- reference & test -------------------------------


def _reference(x, w, b, gamma, beta, use_tanh=False, eps=1e-5,
               matmul_dtype=jnp.bfloat16):
    """Pure-JAX reference.  Matmul operands rounded to the same dtype the kernel feeds
    the MXU; bias IS included here to demonstrate that training-mode BN cancels it.
    Pass matmul_dtype=None for full-f32 parity checks against PyTorch."""
    if matmul_dtype is not None:
        xm = x.astype(matmul_dtype).astype(jnp.float32)
        wm = w.astype(matmul_dtype).astype(jnp.float32)
    else:
        xm, wm = x, w
    y = xm @ wm + b
    mean = y.mean(axis=0, keepdims=True)
    var = ((y - mean) ** 2).mean(axis=0, keepdims=True)
    z = (y - mean) / jnp.sqrt(var + eps) * gamma + beta
    return jnp.tanh(z) if use_tanh else jnp.maximum(z, 0.0)


def _make_params(key, in_features, out_features):
    k_w, k_b, k_g, k_be = jax.random.split(key, 4)
    bound = 1.0 / (in_features ** 0.5)
    w = jax.random.uniform(k_w, (in_features, out_features), jnp.float32,
                           minval=-bound, maxval=bound)          # fc1.weight (pre-transposed)
    b = jax.random.uniform(k_b, (out_features,), jnp.float32,
                           minval=-bound, maxval=bound)          # fc1.bias
    gamma = 1.0 + 0.1 * jax.random.normal(k_g, (out_features,), jnp.float32)  # bn1.weight
    beta = 0.1 * jax.random.normal(k_be, (out_features,), jnp.float32)        # bn1.bias
    return w, b, gamma, beta


if __name__ == "__main__":
    root = jax.random.PRNGKey(0)
    k_x1, k_p1, k_x2, k_p2 = jax.random.split(root, 4)

    # --- Case 1: module-scale shapes, single-K / single-tile fast path ---------
    batch, in_features, out_features = 8, 32, 64
    x = jax.random.normal(k_x1, (batch, in_features), dtype=jnp.float32)
    w, b, gamma, beta = _make_params(k_p1, in_features, out_features)

    params = prepare_fc_block_params(w, gamma, beta, b)   # hoisted one-time prep

    out = jax.block_until_ready(fc_block_apply(x, params, use_tanh=False))
    ref = _reference(x, w, b, gamma, beta, use_tanh=False)
    assert out.shape == (batch, out_features)
    assert jnp.allclose(out, ref, atol=2e-3, rtol=2e-3), \
        f"relu path mismatch: max err {jnp.max(jnp.abs(out - ref))}"

    out_t = jax.block_until_ready(fc_block_apply(x, params, use_tanh=True))
    ref_t = _reference(x, w, b, gamma, beta, use_tanh=True)
    assert jnp.allclose(out_t, ref_t, atol=2e-3, rtol=2e-3), \
        f"tanh path mismatch: max err {jnp.max(jnp.abs(out_t - ref_t))}"

    # --- Case 2: exercise multi out-tile + K-tiled reduction path --------------
    batch2, in2, out2 = 16, 256, 384
    x2 = jax.random.normal(k_x2, (batch2, in2), dtype=jnp.float32)
    w2, b2, gamma2, beta2 = _make_params(k_p2, in2, out2)
    params2 = prepare_fc_block_params(w2, gamma2, beta2, b2)
    # Tiny budget forces the K-tiled kernel (grid = (2 out tiles, 2 K tiles)).
    out2_k = jax.block_until_ready(
        fc_block_apply(x2, params2, use_tanh=False, vmem_budget_bytes=300 * 1024))
    ref2 = _reference(x2, w2, b2, gamma2, beta2, use_tanh=False)
    assert out2_k.shape == (batch2, out2)
    assert jnp.allclose(out2_k, ref2, atol=2e-3, rtol=2e-3), \
        f"k-tiled path mismatch: max err {jnp.max(jnp.abs(out2_k - ref2))}"

    print("KERNEL_OK")
</pallas_src>

<mosaic_0001>
module attributes {stable_mosaic.version = 11 : i64} {
  func.func @_fc_block_kernel_single(%arg0: i32, %arg1: memref<8x128xbf16, #tpu.memory_space<vmem>>, %arg2: memref<128x128xbf16, #tpu.memory_space<vmem>>, %arg3: memref<2x128xf32, #tpu.memory_space<vmem>>, %arg4: memref<8x128xf32, #tpu.memory_space<vmem>>) attributes {dimension_semantics = [#tpu.dimension_semantics<parallel>], iteration_bounds = array<i64: 1>, scalar_prefetch = 0 : i64, scratch_operands = 0 : i64, tpu.core_type = #tpu.core_type<tc>, window_params = [{pipeline_mode = #tpu.pipeline_mode<synchronous>, transform_indices = @transform_0, window_bounds = array<i64: 8, 128>}, {transform_indices = @transform_1, window_bounds = array<i64: 128, 128>}, {transform_indices = @transform_2, window_bounds = array<i64: 2, 128>}, {transform_indices = @transform_3, window_bounds = array<i64: 8, 128>}]} {
    %c0 = arith.constant 0 : index
    %c0_0 = arith.constant 0 : index
    %0 = vector.load %arg1[%c0, %c0_0] : memref<8x128xbf16, #tpu.memory_space<vmem>>, vector<8x128xbf16>
    %c0_1 = arith.constant 0 : index
    %c0_2 = arith.constant 0 : index
    %1 = vector.load %arg2[%c0_1, %c0_2] : memref<128x128xbf16, #tpu.memory_space<vmem>>, vector<128x128xbf16>
    %cst = arith.constant dense<0.000000e+00> : vector<8x128xf32>
    %2 = tpu.matmul %0, %1, %cst {dimension_numbers = #tpu.dot_dimension_numbers<[1], [0], [0], [1], [0, 0, 1, 1], [], []>} : vector<8x128xbf16>, vector<128x128xbf16>, vector<8x128xf32> -> vector<8x128xf32>
    %cst_3 = arith.constant dense<0.000000e+00> : vector<128xf32>
    %3 = vector.multi_reduction <add>, %2, %cst_3 [0] : vector<8x128xf32> to vector<128xf32>
    %4 = vector.shape_cast %3 : vector<128xf32> to vector<1x128xf32>
    %cst_4 = arith.constant 8.000000e+00 : f32
    %5 = vector.broadcast %cst_4 : f32 to vector<1x128xf32>
    %6 = arith.divf %4, %5 : vector<1x128xf32>
    %7 = vector.broadcast %6 : vector<1x128xf32> to vector<8x128xf32>
    %8 = arith.subf %2, %7 : vector<8x128xf32>
    %9 = arith.mulf %8, %8 : vector<8x128xf32>
    %cst_5 = arith.constant dense<0.000000e+00> : vector<128xf32>
    %10 = vector.multi_reduction <add>, %9, %cst_5 [0] : vector<8x128xf32> to vector<128xf32>
    %11 = vector.shape_cast %10 : vector<128xf32> to vector<1x128xf32>
    %cst_6 = arith.constant 8.000000e+00 : f32
    %12 = vector.broadcast %cst_6 : f32 to vector<1x128xf32>
    %13 = arith.divf %11, %12 : vector<1x128xf32>
    %c0_7 = arith.constant 0 : index
    %c0_8 = arith.constant 0 : index
    %14 = vector.load %arg3[%c0_7, %c0_8] : memref<2x128xf32, #tpu.memory_space<vmem>>, vector<1x128xf32>
    %c1 = arith.constant 1 : index
    %c0_9 = arith.constant 0 : index
    %15 = vector.load %arg3[%c1, %c0_9] : memref<2x128xf32, #tpu.memory_space<vmem>>, vector<1x128xf32>
    %cst_10 = arith.constant 9.99999974E-6 : f32
    %16 = vector.broadcast %cst_10 : f32 to vector<1x128xf32>
    %17 = arith.addf %13, %16 : vector<1x128xf32>
    %18 = math.rsqrt %17 : vector<1x128xf32>
    %19 = arith.mulf %18, %14 : vector<1x128xf32>
    %20 = vector.broadcast %19 : vector<1x128xf32> to vector<8x128xf32>
    %21 = arith.mulf %8, %20 : vector<8x128xf32>
    %22 = vector.broadcast %15 : vector<1x128xf32> to vector<8x128xf32>
    %23 = arith.addf %21, %22 : vector<8x128xf32>
    %cst_11 = arith.constant 0.000000e+00 : f32
    %24 = vector.broadcast %cst_11 : f32 to vector<8x128xf32>
    %25 = arith.maximumf %23, %24 : vector<8x128xf32>
    %c0_12 = arith.constant 0 : index
    %c0_13 = arith.constant 0 : index
    %26 = vector.load %arg4[%c0_12, %c0_13] : memref<8x128xf32, #tpu.memory_space<vmem>>, vector<8x128xf32>
    tpu.vector_store %arg4[%c0_12, %c0_13], %25 {strides = array<i32>} : memref<8x128xf32, #tpu.memory_space<vmem>>, vector<8x128xf32>,
    return
  }
  func.func @transform_0(%arg0: i32) -> (i32, i32) {
    %c0_i32 = arith.constant 0 : i32
    %c0_i32_0 = arith.constant 0 : i32
    %c0_i32_1 = arith.constant 0 : i32
    return %c0_i32, %c0_i32_0 : i32, i32
  }
  func.func @transform_1(%arg0: i32) -> (i32, i32) {
    %c0_i32 = arith.constant 0 : i32
    %c0_i32_0 = arith.constant 0 : i32
    return %c0_i32, %arg0 : i32, i32
  }
  func.func @transform_2(%arg0: i32) -> (i32, i32) {
    %c0_i32 = arith.constant 0 : i32
    %c0_i32_0 = arith.constant 0 : i32
    return %c0_i32, %arg0 : i32, i32
  }
  func.func @transform_3(%arg0: i32) -> (i32, i32) {
    %c0_i32 = arith.constant 0 : i32
    %c0_i32_0 = arith.constant 0 : i32
    return %c0_i32, %arg0 : i32, i32
  }
}

</mosaic_0001>

<llo_original>
// kernel: tpu_custom_call.1
$region0: #{tpu_custom_call.1}
  #allocation0 [shape = 'u32[]', space=smem, size = 0x4, offset = 0x4, fixed_abs, tag = 'smem constant byte address 0x4 - core index']
  #allocation1 [shape = 'u32[72,128]{1,0:T(1,128)}', space=vmem, size = 0x9000, scoped, tag = 'internal scratch']
  %s0 = inlined_call_operand.hbm [shape: bf16[8,128], index: 0, kind: input, shape index: {}]
  %s1 = inlined_call_operand.hbm [shape: bf16[128,128], index: 1, kind: input, shape index: {}]
  %s2 = inlined_call_operand.hbm [shape: f32[2,128], index: 2, kind: input, shape index: {}]
  %s3 = inlined_call_operand.hbm [shape: f32[8,128], index: 3, kind: output, shape index: {}]
  %s4 = sld [smem:[#allocation0]]
  $region34: #{tpu_custom_call.1} parent=0
    _
  %s6 = ssub.s32 1, %s4
  %s7 = scalar_select 0, %s6, %s4
  $region1: #{tpu_custom_call.1} parent=0
    #allocation2 [shape = 'u8[2048]{0}', space=vmem, size = 0x800, scoped, tag = 'input window, operand 0, single buffered']
    #allocation3 [shape = 's32[1]{0}', space=sflag, size = 0x4, scoped, tag = 'scoped memory for tpu_custom_call.1']
    #allocation4 [shape = 's32[1]{0}', space=sflag, size = 0x4, scoped, tag = 'scoped memory for tpu_custom_call.1']
    #allocation5 [shape = 'u8[32768]{0}', space=vmem, size = 0x8000, scoped, tag = 'input window, operand 1, single buffered']
    #allocation6 [shape = 's32[1]{0}', space=sflag, size = 0x4, scoped, tag = 'scoped memory for tpu_custom_call.1']
    #allocation7 [shape = 'u8[1024]{0}', space=vmem, size = 0x400, scoped, tag = 'input window, operand 2, single buffered']
    #allocation8 [shape = 'u8[4096]{0}', space=vmem, size = 0x1000, scoped, tag = 'output window, operand 0, single buffered']
    %8 = vsyncpa [#allocation3], 0
    %9 = vsyncpa [#allocation6], 0
    %10 = vsyncpa [#allocation4], 0
    // Predicated region
    $region2: #{tpu_custom_call.1} parent=1 // pred_check
      _
    $region3: #{tpu_custom_call.1} parent=1 // pred_check_branch
      %12 = sbr.rel (0) target = $region5
    $region4: #{tpu_custom_call.1} parent=1 // pred_region
      %14 = vsyncadd [#allocation3], 0
      %s16 = sshll.u32 %s0, 4
      %s17 = int_to_ptr.hbm [resolvable:$true] %s16
      %s18 = sshll.u32 [#allocation2], 4
      %s19 = int_to_ptr.vmem [resolvable:$true] %s18
      %21 = dma.hbm_to_vmem [thread:$0]  %s17, 64, %s19, [#allocation3]
    $region5: #{tpu_custom_call.1} parent=1 // pred_fallthru
      _
    // Predicated region
    $region6: #{tpu_custom_call.1} parent=1 // pred_check
      _
    $region7: #{tpu_custom_call.1} parent=1 // pred_check_branch
      %23 = sbr.rel (0) target = $region9
    $region8: #{tpu_custom_call.1} parent=1 // pred_region
      %25 = vsyncadd [#allocation6], 0
      %s26 = sshll.u32 %s1, 4
      %s27 = int_to_ptr.hbm [resolvable:$true] %s26
      %s28 = sshll.u32 [#allocation5], 4
      %s29 = int_to_ptr.vmem [resolvable:$true] %s28
      %34 = dma.hbm_to_vmem [thread:$0]  %s27, 1024, %s29, [#allocation6], 64, 64, 4
    $region9: #{tpu_custom_call.1} parent=1 // pred_fallthru
      _
    // Predicated region
    $region10: #{tpu_custom_call.1} parent=1 // pred_check
      _
    $region11: #{tpu_custom_call.1} parent=1 // pred_check_branch
      %36 = sbr.rel (0) target = $region13
    $region12: #{tpu_custom_call.1} parent=1 // pred_region
      %38 = vsyncadd [#allocation6], 0
      %s40 = sshll.u32 %s2, 4
      %s41 = int_to_ptr.hbm [resolvable:$true] %s40
      %s42 = sshll.u32 [#allocation7], 4
      %s43 = int_to_ptr.vmem [resolvable:$true] %s42
      %45 = dma.hbm_to_vmem [thread:$0]  %s41, 32, %s43, [#allocation6]
    $region13: #{tpu_custom_call.1} parent=1 // pred_fallthru
      _
    // Predicated region
    $region14: #{tpu_custom_call.1} parent=1 // pred_check
      _
    $region15: #{tpu_custom_call.1} parent=1 // pred_check_branch
      %47 = sbr.rel (0) target = $region17
    $region16: #{tpu_custom_call.1} parent=1 // pred_region
      %49 = dma.done [#allocation3], 64
    $region17: #{tpu_custom_call.1} parent=1 // pred_fallthru
      _
    // Predicated region
    $region18: #{tpu_custom_call.1} parent=1 // pred_check
      _
    $region19: #{tpu_custom_call.1} parent=1 // pred_check_branch
      %51 = sbr.rel (0) target = $region21
    $region20: #{tpu_custom_call.1} parent=1 // pred_region
      %53 = dma.done [#allocation6], 1024
    $region21: #{tpu_custom_call.1} parent=1 // pred_fallthru
      _
    // Predicated region
    $region22: #{tpu_custom_call.1} parent=1 // pred_check
      _
    $region23: #{tpu_custom_call.1} parent=1 // pred_check_branch
      %55 = sbr.rel (0) target = $region25
    $region24: #{tpu_custom_call.1} parent=1 // pred_region
      %57 = dma.done [#allocation6], 32
    $region25: #{tpu_custom_call.1} parent=1 // pred_fallthru
      _
    %v58 = vld [vmem:[#allocation2] sm:$0xf]
    %v59 = vld [vmem:[#allocation5] sm:$0xf]
    %v60 = vld [vmem:[#allocation5 + $0x4] sm:$0xf]
    %v61 = vld [vmem:[#allocation5 + $0x8] sm:$0xf]
    %v62 = vld [vmem:[#allocation5 + $0xc] sm:$0xf]
    %v63 = vld [vmem:[#allocation5 + $0x10] sm:$0xf]
    %v64 = vld [vmem:[#allocation5 + $0x14] sm:$0xf]
    %v65 = vld [vmem:[#allocation5 + $0x18] sm:$0xf]
    %v66 = vld [vmem:[#allocation5 + $0x1c] sm:$0xf]
    %v67 = vld [vmem:[#allocation5 + $0x20] sm:$0xf]
    %v68 = vld [vmem:[#allocation5 + $0x24] sm:$0xf]
    %v69 = vld [vmem:[#allocation5 + $0x28] sm:$0xf]
    %v70 = vld [vmem:[#allocation5 + $0x2c] sm:$0xf]
    %v71 = vld [vmem:[#allocation5 + $0x30] sm:$0xf]
    %v72 = vld [vmem:[#allocation5 + $0x34] sm:$0xf]
    %v73 = vld [vmem:[#allocation5 + $0x38] sm:$0xf]
    %v74 = vld [vmem:[#allocation5 + $0x3c] sm:$0xf]
    %v91 = vunpack.c.l.b16 %v59
    %v92 = vunpack.c.l.b16 %v60
    %v93 = vunpack.c.l.b16 %v61
    %v94 = vunpack.c.l.b16 %v62
    %v95 = vunpack.c.l.b16 %v63
    %v96 = vunpack.c.l.b16 %v64
    %v97 = vunpack.c.l.b16 %v65
    %v98 = vunpack.c.l.b16 %v66
    %v99 = vunpack.c.l.b16 %v67
    %v100 = vunpack.c.l.b16 %v68
    %v101 = vunpack.c.l.b16 %v69
    %v102 = vunpack.c.l.b16 %v70
    %v103 = vunpack.c.l.b16 %v71
    %v104 = vunpack.c.l.b16 %v72
    %v105 = vunpack.c.l.b16 %v73
    %v106 = vunpack.c.l.b16 %v74
    %v107 = vpack.c.b16 %v92, %v91
    %v108 = vpack.c.b16 %v94, %v93
    %v109 = vpack.c.b16 %v96, %v95
    %v110 = vpack.c.b16 %v98, %v97
    %v111 = vpack.c.b16 %v100, %v99
    %v112 = vpack.c.b16 %v102, %v101
    %v113 = vpack.c.b16 %v104, %v103
    %v114 = vpack.c.b16 %v106, %v105
    %123 = vmatpush.bf16.msra.mxu0 %v114
    %124 = vmatpush.bf16.msra.mxu0 %v113
    %125 = vmatpush.bf16.msra.mxu0 %v112
    %126 = vmatpush.bf16.msra.mxu0 %v111
    %127 = vmatpush.bf16.msra.mxu0 %v110
    %128 = vmatpush.bf16.msra.mxu0 %v109
    %129 = vmatpush.bf16.msra.mxu0 %v108
    %130 = vmatpush.bf16.msra.mxu0 %v107
    %131 = vmatmul.bf16.gmra.mxu0 %v58
    %v132 = vpop.f32.mrf.mxu0
    %v133 = vadd.f32 0.0, %v132
    %v134 = vpop.f32.mrf.mxu0
    %135 = vdwg.mxu0
    %v136 = vrot.slane %v133, 4
    %v137 = vadd.f32 %v133, %v136
    %v138 = vrot.slane %v137, 2
    %v139 = vadd.f32 %v137, %v138
    %v140 = vrot.slane %v139, 1
    %v141 = vadd.f32 %v139, %v140
    %v142 = vrcp.pop 8.0
    %v143 = vmul.f32 8.0, %v142
    %v144 = vsub.f32 1.0, %v143
    %v145 = vmul.f32 %v142, %v144
    %v146 = vadd.f32 %v142, %v145
    %vm147 = vweird.f32 %v142
    %v148 = vsel %vm147, %v142, %v146
    %v149 = vmul.f32 %v141, %v148
    %v150 = vsub.f32 %v133, %v149
    %v151 = vmul.f32 %v150, %v150
    %v152 = vrot.slane %v151, 4
    %v153 = vadd.f32 %v151, %v152
    %v154 = vrot.slane %v153, 2
    %v155 = vadd.f32 %v153, %v154
    %v156 = vrot.slane %v155, 1
    %v157 = vadd.f32 %v155, %v156
    %v158 = vmul.f32 %v157, %v148
    %v159 = vld [vmem:[#allocation7] sm:$0x1]
    %v160 = vld [vmem:[#allocation7 + $0x1] sm:$0x1]
    %v161 = vadd.f32 %v158, 1e-05
    %v162 = vrsqrt.pop %v161
    %v163 = vmul.f32 %v162, %v161
    %v164 = vmul.f32 %v163, %v162
    %v165 = vmul.f32 0.5, %v164
    %v166 = vsub.f32 1.5, %v165
    %v167 = vmul.f32 %v162, %v166
    %vm168 = vweird.f32 %v161
    %vm169 = vweird.f32 %v162
    %vm170 = vmor %vm168, %vm169
    %v171 = vsel %vm170, %v162, %v167
    %v172 = vmul.f32 %v171, %v159
    %v173 = vperm.slane %v172, 0
    %v174 = vmul.f32 %v150, %v173
    %v175 = vperm.slane %v160, 0
    %v176 = vadd.f32 %v174, %v175
    %v177 = vmax.f32 %v176, 0.0
    %178 = vst [vmem:[#allocation8] sm:$0xff] %v177
    // Predicated region
    $region26: #{tpu_custom_call.1} parent=1 // pred_check
      _
    $region27: #{tpu_custom_call.1} parent=1 // pred_check_branch
      %180 = sbr.rel (0) target = $region29
    $region28: #{tpu_custom_call.1} parent=1 // pred_region
      %182 = vsyncadd [#allocation4], 0
      %s184 = sshll.u32 [#allocation8], 4
      %s185 = int_to_ptr.vmem [resolvable:$true] %s184
      %s186 = sshll.u32 %s3, 4
      %s187 = int_to_ptr.hbm [resolvable:$true] %s186
      %189 = dma.vmem_to_hbm [thread:$0]  %s185, 128, %s187, [#allocation4]
    $region29: #{tpu_custom_call.1} parent=1 // pred_fallthru
      _
    // Predicated region
    $region30: #{tpu_custom_call.1} parent=1 // pred_check
      _
    $region31: #{tpu_custom_call.1} parent=1 // pred_check_branch
      %191 = sbr.rel (0) target = $region33
    $region32: #{tpu_custom_call.1} parent=1 // pred_region
      %193 = dma.done [#allocation4], 128
    $region33: #{tpu_custom_call.1} parent=1 // pred_fallthru
      _
    %194 = vsyncpa [#allocation3], 1
    %195 = vsyncpa [#allocation6], 1
    %196 = vsyncpa [#allocation4], 1

</llo_original>
